<compile_context>
chip_gen: v5e
topology: v5e:2x2
jax: 0.10.0
libtpu: 0.0.40
codegen_flags: <defaults>
</compile_context>

<pallas_src>
import jax
import jax.numpy as jnp
from jax.experimental import pallas as pl
from jax.experimental.pallas import tpu as pltpu


# ---------------------------------------------------------------------------
# Kernels: o[C_out, TM] = W[C_out, C_in] @ x[C_in, TM] + b[C_out, 1]
# ---------------------------------------------------------------------------

def _pointwise_conv_vpu_kernel(x_ref, w_ref, b_ref, o_ref):
    """Tiny-channel path: unrolled VPU broadcast multiply-adds (skips the MXU)."""
    # x_ref: (C_in, TM)  w_ref: (C_out, C_in)  b_ref: (C_out, 1)  o_ref: (C_out, TM)
    x = x_ref[...].astype(jnp.float32)
    wmat = w_ref[...].astype(jnp.float32)
    c_out, c_in = wmat.shape
    tm = x.shape[-1]
    # bias: per-sublane (C_out, 1) -> lane-broadcast across the spatial tile
    acc = jnp.broadcast_to(b_ref[...].astype(jnp.float32), (c_out, tm))
    for i in range(c_in):  # static unroll; c_in is small on this path
        wi = jnp.broadcast_to(wmat[:, i:i + 1], (c_out, tm))   # lane broadcast
        xi = jnp.broadcast_to(x[i:i + 1, :], (c_out, tm))      # sublane broadcast
        acc = acc + wi * xi
    o_ref[...] = acc.astype(o_ref.dtype)


def _pointwise_conv_mxu_kernel(x_ref, w_ref, b_ref, o_ref):
    """Large-channel path: MXU matmul with f32 accumulation."""
    x = x_ref[...]
    wmat = w_ref[...].astype(x.dtype)
    acc = jnp.dot(wmat, x, preferred_element_type=jnp.float32)
    o_ref[...] = (acc + b_ref[...].astype(jnp.float32)).astype(o_ref.dtype)


# ---------------------------------------------------------------------------
# Wrapper
# ---------------------------------------------------------------------------

def _choose_tile_m(m, c_in, c_out, itemsize, stream_budget_bytes=8 * 1024 * 1024):
    """Largest multiple of 128 that divides m and keeps the double-buffered
    streamed slabs (x tile + out tile) within a modest VMEM budget (sized so it
    also fits comfortably on v7x's smaller 64 MiB VMEM)."""
    cap = max(128, stream_budget_bytes // (2 * (c_in + c_out) * itemsize))
    best = 0
    t = 128
    limit = min(m, cap)
    while t <= limit:
        if m % t == 0:
            best = t
        t += 128
    if best:
        return best
    # No 128-multiple divides m (or m < 128): fall back to the full spatial
    # extent as one block (block dim == full array dim satisfies layout rules).
    return m


def pointwise_conv3d(x, weight, bias):
    """1x1x1 Conv3d (stride 1, pad 0) on an NCDHW tensor via a Pallas kernel.

    x: (N, C_in, T, H, W), weight: (C_out, C_in, 1, 1, 1), bias: (C_out,)
    returns: (N, C_out, T, H, W), same dtype as x.
    """
    n, c_in, t, h, w = x.shape
    c_out = weight.shape[0]
    m = t * h * w

    # NCDHW -> (N, C_in, M): trailing-dim merge only (free view, no HBM relayout).
    x3 = x.reshape(n, c_in, m)
    w_mat = weight.reshape(c_out, c_in)          # (C_out, C_in)
    b_col = bias.reshape(c_out, 1).astype(jnp.float32)   # per-sublane bias

    itemsize = jnp.dtype(x.dtype).itemsize
    tile_m = _choose_tile_m(m, c_in, c_out, itemsize)
    grid = (n, m // tile_m)                      # tile_m divides m by construction

    # Tiny channels: MXU would be <4% utilized, use VPU FMAs instead.
    use_vpu = (c_in * c_out) <= 256
    kernel = _pointwise_conv_vpu_kernel if use_vpu else _pointwise_conv_mxu_kernel

    cost = pl.CostEstimate(
        flops=2 * n * m * c_in * c_out,
        transcendentals=0,
        bytes_accessed=n * m * (c_in + c_out) * itemsize + (c_out * c_in + c_out) * 4,
    )

    out3 = pl.pallas_call(
        kernel,
        out_shape=jax.ShapeDtypeStruct((n, c_out, m), x.dtype),
        grid_spec=pltpu.PrefetchScalarGridSpec(
            num_scalar_prefetch=0,
            grid=grid,
            in_specs=[
                # x: lane-dense spatial tile, channels on sublanes
                pl.BlockSpec((None, c_in, tile_m), lambda b, i: (b, 0, i)),
                # weight / bias: constant block index -> stay VMEM-resident
                pl.BlockSpec((c_out, c_in), lambda b, i: (0, 0)),
                pl.BlockSpec((c_out, 1), lambda b, i: (0, 0)),
            ],
            out_specs=pl.BlockSpec((None, c_out, tile_m), lambda b, i: (b, 0, i)),
        ),
        compiler_params=pltpu.CompilerParams(
            # both axes independent -> megacore sharding on v7x's 2 TensorCores
            dimension_semantics=("parallel", "parallel"),
            vmem_limit_bytes=32 * 1024 * 1024,
        ),
        cost_estimate=cost,
    )(x3, w_mat, b_col)

    # (N, C_out, M) -> NCDHW: trailing-dim split only (free view).
    return out3.reshape(n, c_out, t, h, w)


# ---------------------------------------------------------------------------
# MetaBlock
# ---------------------------------------------------------------------------

def init_metablock_params(key, in_channels, out_channels):
    """Deterministic parameter init mirroring MetaBlock.__init__."""
    params = {}
    if in_channels != out_channels:
        # nn.Conv3d(in, out, k=1): weight (out, in, 1, 1, 1)
        # kaiming_normal_(mode='fan_out', nonlinearity='relu'):
        #   fan_out = out_channels * 1*1*1,  std = sqrt(2 / fan_out)
        std = (2.0 / float(out_channels)) ** 0.5
        wkey, _ = jax.random.split(key)
        params["reduction_w"] = (
            jax.random.normal(wkey, (out_channels, in_channels, 1, 1, 1), jnp.float32) * std
        )
        params["reduction_b"] = jnp.zeros((out_channels,), jnp.float32)
    return params


def metablock_forward(params, x, in_channels, out_channels):
    """MetaBlock.forward.  x: (N, C_in, T, H, W) NCDHW (PyTorch convention)."""
    # TODO(synk): MGMABasicBlock / MGMABottleneckBlock / MGMAShuffleV2Block are defined
    # elsewhere in lib/models/mgma_model.py and were not provided in the reference, so
    # the shape-preserving `self.block(x)` is passed through unchanged here.
    z = x
    if in_channels == out_channels:
        return z
    return pointwise_conv3d(z, params["reduction_w"], params["reduction_b"])


if __name__ == "__main__":
    key = jax.random.PRNGKey(0)
    in_channels, out_channels = 4, 8
    N, T, H, W = 2, 4, 8, 8                     # per-batch spatial M = 256 (128-multiple)

    pkey, xkey = jax.random.split(key)
    params = init_metablock_params(pkey, in_channels, out_channels)
    x = jax.random.normal(xkey, (N, in_channels, T, H, W), jnp.float32)

    out = metablock_forward(params, x, in_channels, out_channels)
    out = jax.block_until_ready(out)
    assert out.shape == (N, out_channels, T, H, W)

    # reference check of the Pallas pointwise-conv path (plain JAX einsum)
    ref = jnp.einsum(
        "ncthw,oc->nothw", x, params["reduction_w"].reshape(out_channels, in_channels)
    ) + params["reduction_b"].reshape(1, out_channels, 1, 1, 1)
    assert jnp.allclose(out, ref, atol=1e-5, rtol=1e-5)

    # identity path (in_channels == out_channels): reduction is skipped entirely
    same = metablock_forward({}, x, in_channels, in_channels)
    assert jnp.array_equal(same, x)

    print("KERNEL_OK")
</pallas_src>

<mosaic_0001>
module attributes {stable_mosaic.version = 11 : i64} {
  func.func @_pointwise_conv_vpu_kernel(%arg0: i32, %arg1: i32, %arg2: memref<1x4x256xf32, #tpu.memory_space<vmem>>, %arg3: memref<8x4xf32, #tpu.memory_space<vmem>>, %arg4: memref<8x1xf32, #tpu.memory_space<vmem>>, %arg5: memref<1x8x256xf32, #tpu.memory_space<vmem>>) attributes {dimension_semantics = [#tpu.dimension_semantics<parallel>, #tpu.dimension_semantics<parallel>], iteration_bounds = array<i64: 2, 1>, scalar_prefetch = 0 : i64, scratch_operands = 0 : i64, tpu.core_type = #tpu.core_type<tc>, window_params = [{transform_indices = @transform_0, window_bounds = array<i64: 1, 4, 256>}, {pipeline_mode = #tpu.pipeline_mode<synchronous>, transform_indices = @transform_1, window_bounds = array<i64: 8, 4>}, {pipeline_mode = #tpu.pipeline_mode<synchronous>, transform_indices = @transform_2, window_bounds = array<i64: 8, 1>}, {transform_indices = @transform_3, window_bounds = array<i64: 1, 8, 256>}]} {
    %c0 = arith.constant 0 : index
    %c0_0 = arith.constant 0 : index
    %c0_1 = arith.constant 0 : index
    %0 = vector.load %arg2[%c0, %c0_0, %c0_1] : memref<1x4x256xf32, #tpu.memory_space<vmem>>, vector<1x4x256xf32>
    %1 = vector.shape_cast %0 : vector<1x4x256xf32> to vector<4x256xf32>
    %c0_2 = arith.constant 0 : index
    %c0_3 = arith.constant 0 : index
    %2 = vector.load %arg3[%c0_2, %c0_3] : memref<8x4xf32, #tpu.memory_space<vmem>>, vector<8x4xf32>
    %c0_4 = arith.constant 0 : index
    %c0_5 = arith.constant 0 : index
    %3 = vector.load %arg4[%c0_4, %c0_5] : memref<8x1xf32, #tpu.memory_space<vmem>>, vector<8x1xf32>
    %4 = vector.shape_cast %3 : vector<8x1xf32> to vector<8x1xf32>
    %5 = vector.broadcast %4 : vector<8x1xf32> to vector<8x256xf32>
    %6 = vector.extract_strided_slice %2 {offsets = [0, 0], sizes = [8, 1], strides = [1, 1]} : vector<8x4xf32> to vector<8x1xf32>
    %7 = vector.shape_cast %6 : vector<8x1xf32> to vector<8x1xf32>
    %8 = vector.broadcast %7 : vector<8x1xf32> to vector<8x256xf32>
    %9 = vector.extract_strided_slice %1 {offsets = [0, 0], sizes = [1, 256], strides = [1, 1]} : vector<4x256xf32> to vector<1x256xf32>
    %10 = vector.shape_cast %9 : vector<1x256xf32> to vector<1x256xf32>
    %11 = vector.broadcast %10 : vector<1x256xf32> to vector<8x256xf32>
    %12 = arith.mulf %8, %11 : vector<8x256xf32>
    %13 = arith.addf %5, %12 : vector<8x256xf32>
    %14 = vector.extract_strided_slice %2 {offsets = [0, 1], sizes = [8, 1], strides = [1, 1]} : vector<8x4xf32> to vector<8x1xf32>
    %15 = vector.shape_cast %14 : vector<8x1xf32> to vector<8x1xf32>
    %16 = vector.broadcast %15 : vector<8x1xf32> to vector<8x256xf32>
    %17 = vector.extract_strided_slice %1 {offsets = [1, 0], sizes = [1, 256], strides = [1, 1]} : vector<4x256xf32> to vector<1x256xf32>
    %18 = vector.shape_cast %17 : vector<1x256xf32> to vector<1x256xf32>
    %19 = vector.broadcast %18 : vector<1x256xf32> to vector<8x256xf32>
    %20 = arith.mulf %16, %19 : vector<8x256xf32>
    %21 = arith.addf %13, %20 : vector<8x256xf32>
    %22 = vector.extract_strided_slice %2 {offsets = [0, 2], sizes = [8, 1], strides = [1, 1]} : vector<8x4xf32> to vector<8x1xf32>
    %23 = vector.shape_cast %22 : vector<8x1xf32> to vector<8x1xf32>
    %24 = vector.broadcast %23 : vector<8x1xf32> to vector<8x256xf32>
    %25 = vector.extract_strided_slice %1 {offsets = [2, 0], sizes = [1, 256], strides = [1, 1]} : vector<4x256xf32> to vector<1x256xf32>
    %26 = vector.shape_cast %25 : vector<1x256xf32> to vector<1x256xf32>
    %27 = vector.broadcast %26 : vector<1x256xf32> to vector<8x256xf32>
    %28 = arith.mulf %24, %27 : vector<8x256xf32>
    %29 = arith.addf %21, %28 : vector<8x256xf32>
    %30 = vector.extract_strided_slice %2 {offsets = [0, 3], sizes = [8, 1], strides = [1, 1]} : vector<8x4xf32> to vector<8x1xf32>
    %31 = vector.shape_cast %30 : vector<8x1xf32> to vector<8x1xf32>
    %32 = vector.broadcast %31 : vector<8x1xf32> to vector<8x256xf32>
    %33 = vector.extract_strided_slice %1 {offsets = [3, 0], sizes = [1, 256], strides = [1, 1]} : vector<4x256xf32> to vector<1x256xf32>
    %34 = vector.shape_cast %33 : vector<1x256xf32> to vector<1x256xf32>
    %35 = vector.broadcast %34 : vector<1x256xf32> to vector<8x256xf32>
    %36 = arith.mulf %32, %35 : vector<8x256xf32>
    %37 = arith.addf %29, %36 : vector<8x256xf32>
    %c0_6 = arith.constant 0 : index
    %c0_7 = arith.constant 0 : index
    %c0_8 = arith.constant 0 : index
    %38 = vector.load %arg5[%c0_6, %c0_7, %c0_8] : memref<1x8x256xf32, #tpu.memory_space<vmem>>, vector<1x8x256xf32>
    %39 = vector.shape_cast %38 : vector<1x8x256xf32> to vector<8x256xf32>
    %40 = vector.shape_cast %37 : vector<8x256xf32> to vector<1x8x256xf32>
    tpu.vector_store %arg5[%c0_6, %c0_7, %c0_8], %40 {strides = array<i32>} : memref<1x8x256xf32, #tpu.memory_space<vmem>>, vector<1x8x256xf32>,
    return
  }
  func.func @transform_0(%arg0: i32, %arg1: i32) -> (i32, i32, i32) {
    %c0_i32 = arith.constant 0 : i32
    %c0_i32_0 = arith.constant 0 : i32
    return %arg0, %c0_i32, %arg1 : i32, i32, i32
  }
  func.func @transform_1(%arg0: i32, %arg1: i32) -> (i32, i32) {
    %c0_i32 = arith.constant 0 : i32
    %c0_i32_0 = arith.constant 0 : i32
    %c0_i32_1 = arith.constant 0 : i32
    return %c0_i32, %c0_i32_0 : i32, i32
  }
  func.func @transform_2(%arg0: i32, %arg1: i32) -> (i32, i32) {
    %c0_i32 = arith.constant 0 : i32
    %c0_i32_0 = arith.constant 0 : i32
    %c0_i32_1 = arith.constant 0 : i32
    return %c0_i32, %c0_i32_0 : i32, i32
  }
  func.func @transform_3(%arg0: i32, %arg1: i32) -> (i32, i32, i32) {
    %c0_i32 = arith.constant 0 : i32
    %c0_i32_0 = arith.constant 0 : i32
    return %arg0, %c0_i32, %arg1 : i32, i32, i32
  }
}

</mosaic_0001>

<llo_original>
// kernel: tpu_custom_call.1
$region0: #{tpu_custom_call.1}
  #allocation0 [shape = 'u32[]', space=smem, size = 0x4, offset = 0x4, fixed_abs, tag = 'smem constant byte address 0x4 - core index']
  #allocation1 [shape = 'u32[72,128]{1,0:T(1,128)}', space=vmem, size = 0x9000, scoped, tag = 'internal scratch']
  %s0 = inlined_call_operand.vmem [shape: f32[2,4,256], index: 0, kind: input, shape index: {}]
  %s1 = inlined_call_operand.vmem [shape: f32[8,4], index: 1, kind: input, shape index: {}]
  %s2 = inlined_call_operand.vmem [shape: f32[8,1], index: 2, kind: input, shape index: {}]
  %s3 = inlined_call_operand.hbm [shape: f32[2,8,256], index: 3, kind: output, shape index: {}]
  %s4 = sld [smem:[#allocation0]]
  $region45: #{tpu_custom_call.1} parent=0
    _
  %s6 = ssub.s32 1, %s4
  %s7 = scalar_select 0, %s6, %s4
  $region1: #{tpu_custom_call.1} parent=0
    #allocation2 [shape = 'u8[16384]{0}', space=vmem, size = 0x4000, scoped, tag = 'output window, operand 0']
    #allocation3 [shape = 's32[2]{0}', space=sflag, size = 0x8, scoped, tag = 'scoped memory for tpu_custom_call.1']
    %8 = vsyncpa [#allocation3], 0
    %s9 = scalar_lea.sflag [#allocation3], 1
    %10 = vsyncpa %s9, 0
    loop: start=0, step=1, limit=4
    $region2: #{tpu_custom_call.1} parent=1 // loop_pre_header
      _
    $region3: #{tpu_custom_call.1} parent=1 // loop_header
      %s12 = sphi 0, %s16
      %p13 = scmp.ge.s32.totalorder %s12, 4
      %s19 = sphi 0, %s31
      %s20 = sphi 0, %s27
      %s21 = sphi 0, %s19
      %s22 = sphi 0, %s20
      %s23 = sphi 0, %s21
      %s24 = sphi 0, %s22
      %s36 = sphi 0, %s38
      %s39 = sphi 0, %s36
      %s40 = sphi 0, %s39
      %s56 = sphi 0, %s40
      %s60 = sphi 0, %s60
      %s62 = sphi 0, %s60
      %s63 = sphi 0, %s62
      %s77 = sphi 0, %s63
      %s81 = sphi 0, %s81
      %s83 = sphi 0, %s81
      %s84 = sphi 0, %s83
      %s98 = sphi 0, %s84
      %s106 = sphi 0, %s108
      %s109 = sphi 0, %s106
      %s110 = sphi 0, %s109
      %s126 = sphi 0, %s110
    $region4: #{tpu_custom_call.1} parent=1 // loop_header_branch
      %15 = sbr.rel (%p13) target = $region8
    $region5: #{tpu_custom_call.1} parent=1 // loop_body
      %s17 = ssub.s32 %s12, 1
      %s18 = ssub.s32 %s12, 2
      %s25 = sadd.s32 1, %s20
      %p26 = scmp.ge.s32.totalorder %s25, 1
      %s27 = scalar_select %p26, 0, %s25
      %s28 = sadd.s32 1, %s19
      %s29 = scalar_select %p26, %s28, %s19
      %p30 = scmp.ge.s32.totalorder %s29, 2
      %s31 = scalar_select %p30, 0, %s29
      %s32 = ssub.s32 %s19, %s31
      %s33 = ssub.s32 %s20, %s27
      %s34 = sor.u32 %s32, %s33
      %p35 = scmp.eq.s32.totalorder %s34, 0
      %s37 = sadd.s32 %s36, 1
      %s38 = scalar_select %p35, %s36, %s37
      %p41 = pneg %p35
      %p42 = scmp.eq.s32.totalorder %s12, 1
      %p43 = por %p41, %p42
      %p44 = scmp.ne.s32.totalorder %s36, %s39
      %p45 = scmp.eq.s32.totalorder %s12, 0
      %p46 = por %p44, %p45
      %p47 = scmp.ne.s32.totalorder %s36, %s39
      %p48 = scmp.eq.s32.totalorder %s17, 1
      %p49 = por %p47, %p48
      %p50 = scmp.ne.s32.totalorder %s39, %s40
      %p51 = scmp.eq.s32.totalorder %s17, 0
      %p52 = por %p50, %p51
      %p53 = scmp.ne.s32.totalorder %s39, %s40
      %p54 = scmp.eq.s32.totalorder %s18, 1
      %p55 = por %p53, %p54
      %p57 = scmp.ne.s32.totalorder %s40, %s56
      %p58 = scmp.eq.s32.totalorder %s18, 0
      %p59 = por %p57, %p58
      %s61 = sadd.s32 %s60, 1
      %p64 = scmp.eq.s32.totalorder %s12, 1
      %p65 = scmp.ne.s32.totalorder %s60, %s62
      %p66 = scmp.eq.s32.totalorder %s12, 0
      %p67 = por %p65, %p66
      %p68 = scmp.ne.s32.totalorder %s60, %s62
      %p69 = scmp.eq.s32.totalorder %s17, 1
      %p70 = por %p68, %p69
      %p71 = scmp.ne.s32.totalorder %s62, %s63
      %p72 = scmp.eq.s32.totalorder %s17, 0
      %p73 = por %p71, %p72
      %p74 = scmp.ne.s32.totalorder %s62, %s63
      %p75 = scmp.eq.s32.totalorder %s18, 1
      %p76 = por %p74, %p75
      %p78 = scmp.ne.s32.totalorder %s63, %s77
      %p79 = scmp.eq.s32.totalorder %s18, 0
      %p80 = por %p78, %p79
      %s82 = sadd.s32 %s81, 1
      %p85 = scmp.eq.s32.totalorder %s12, 1
      %p86 = scmp.ne.s32.totalorder %s81, %s83
      %p87 = scmp.eq.s32.totalorder %s12, 0
      %p88 = por %p86, %p87
      %p89 = scmp.ne.s32.totalorder %s81, %s83
      %p90 = scmp.eq.s32.totalorder %s17, 1
      %p91 = por %p89, %p90
      %p92 = scmp.ne.s32.totalorder %s83, %s84
      %p93 = scmp.eq.s32.totalorder %s17, 0
      %p94 = por %p92, %p93
      %p95 = scmp.ne.s32.totalorder %s83, %s84
      %p96 = scmp.eq.s32.totalorder %s18, 1
      %p97 = por %p95, %p96
      %p99 = scmp.ne.s32.totalorder %s84, %s98
      %p100 = scmp.eq.s32.totalorder %s18, 0
      %p101 = por %p99, %p100
      %s102 = ssub.s32 %s19, %s31
      %s103 = ssub.s32 %s20, %s27
      %s104 = sor.u32 %s102, %s103
      %p105 = scmp.eq.s32.totalorder %s104, 0
      %s107 = sadd.s32 %s106, 1
      %s108 = scalar_select %p105, %s106, %s107
      %p111 = pneg %p105
      %p112 = scmp.eq.s32.totalorder %s12, 1
      %p113 = por %p111, %p112
      %p114 = scmp.ne.s32.totalorder %s106, %s109
      %p115 = scmp.eq.s32.totalorder %s12, 0
      %p116 = por %p114, %p115
      %p117 = scmp.ne.s32.totalorder %s106, %s109
      %p118 = scmp.eq.s32.totalorder %s17, 1
      %p119 = por %p117, %p118
      %p120 = scmp.ne.s32.totalorder %s109, %s110
      %p121 = scmp.eq.s32.totalorder %s17, 0
      %p122 = por %p120, %p121
      %p123 = scmp.ne.s32.totalorder %s109, %s110
      %p124 = scmp.eq.s32.totalorder %s18, 1
      %p125 = por %p123, %p124
      %p127 = scmp.ne.s32.totalorder %s110, %s126
      %p128 = scmp.eq.s32.totalorder %s18, 0
      %p129 = por %p127, %p128
      %p130 = scmp.le.s32.totalorder 1, %s12
      %p131 = scmp.lt.s32.totalorder %s12, 3
      %p132 = pnand %p130, %p131
      %p133 = pneg %p132
      // Predicated region
      $region9: #{tpu_custom_call.1} parent=5 // pred_check
        _
      $region10: #{tpu_custom_call.1} parent=5 // pred_check_branch
        %135 = sbr.rel (%p132) target = $region12
      $region11: #{tpu_custom_call.1} parent=5 // pred_region
        %s136 = ssub.s32 %s12, 1
        // Predicated region
        $region13: #{tpu_custom_call.1} parent=11 // pred_check
          %p137 = pneg %p73
        $region14: #{tpu_custom_call.1} parent=11 // pred_check_branch
          %139 = sbr.rel (%p137) target = $region16
        $region15: #{tpu_custom_call.1} parent=11 // pred_region
          _
        $region16: #{tpu_custom_call.1} parent=11 // pred_fallthru
          _
        // Predicated region
        $region17: #{tpu_custom_call.1} parent=11 // pred_check
          %p140 = pneg %p94
        $region18: #{tpu_custom_call.1} parent=11 // pred_check_branch
          %142 = sbr.rel (%p140) target = $region20
        $region19: #{tpu_custom_call.1} parent=11 // pred_region
          _
        $region20: #{tpu_custom_call.1} parent=11 // pred_fallthru
          _
      $region12: #{tpu_custom_call.1} parent=5 // pred_fallthru
        _
      %p143 = scmp.lt.s32.totalorder %s12, 2
      // Predicated region
      $region21: #{tpu_custom_call.1} parent=5 // pred_check
        %p144 = pneg %p143
      $region22: #{tpu_custom_call.1} parent=5 // pred_check_branch
        %146 = sbr.rel (%p144) target = $region24
      $region23: #{tpu_custom_call.1} parent=5 // pred_region
        // Predicated region
        $region25: #{tpu_custom_call.1} parent=23 // pred_check
          %p147 = pneg %p46
        $region26: #{tpu_custom_call.1} parent=23 // pred_check_branch
          %149 = sbr.rel (%p147) target = $region28
        $region27: #{tpu_custom_call.1} parent=23 // pred_region
          %s150 = smul.u32 2, %s20
          %p151 = scmp.lt.s32.totalorder %s19, 1
          %s152 = scalar_select %p151, %s19, 1
          %p153 = scmp.lt.s32.totalorder %s150, 1
          %s154 = scalar_select %p153, %s150, 1
          %s155 = smul.addr %s152, 2
          %s156 = sadd.s32 %s154, %s155
          %s157 = smul.addr %s156, 4
          %s158 = scalar_lea.vmem %s0, %s157
          %s159 = smul.u32 2, %s20
        $region28: #{tpu_custom_call.1} parent=23 // pred_fallthru
          _
      $region24: #{tpu_custom_call.1} parent=5 // pred_fallthru
        _
      %p160 = scmp.le.s32.totalorder 1, %s12
      %p161 = scmp.lt.s32.totalorder %s12, 3
      %p162 = pnand %p160, %p161
      %p163 = pneg %p162
      // Predicated region
      $region29: #{tpu_custom_call.1} parent=5 // pred_check
        _
      $region30: #{tpu_custom_call.1} parent=5 // pred_check_branch
        %165 = sbr.rel (%p162) target = $region32
      $region31: #{tpu_custom_call.1} parent=5 // pred_region
        %s166 = ssub.s32 %s12, 1
        %s167 = smul.u32 2, %s22
        %p168 = scmp.lt.s32.totalorder %s21, 1
        %s169 = scalar_select %p168, %s21, 1
        %p170 = scmp.lt.s32.totalorder %s167, 1
        %s171 = scalar_select %p170, %s167, 1
        %s172 = smul.addr %s169, 2
        %s173 = sadd.s32 %s171, %s172
        %s174 = smul.addr %s173, 4
        %s175 = scalar_lea.vmem %s0, %s174
        %p176 = pneg %p52
        %p177 = pneg %p49
        %p178 = pneg %p73
        %p179 = pneg %p70
        %p180 = pneg %p94
        %p181 = pneg %p91
        %p182 = pneg %p122
        %p183 = pneg %p119
        %s184 = sand.u32 %s109, 1
        %s185 = scalar_lea.sflag [#allocation3], %s184
        %s186 = sand.u32 %s109, 1
        %s187 = smul.addr %s186, 16
        %s188 = scalar_lea.vmem [#allocation2], %s187
        %s189 = smul.u32 2, %s22
        %p190 = scmp.lt.s32.totalorder %s21, 1
        %s191 = scalar_select %p190, %s21, 1
        %p192 = scmp.lt.s32.totalorder %s189, 1
        %s193 = scalar_select %p192, %s189, 1
        %s194 = smul.addr %s191, 2
        %s195 = sadd.s32 %s193, %s194
        %s196 = smul.addr %s195, 4
        %s197 = scalar_lea.vmem %s0, %s196
        %s198 = smul.u32 2, %s22
        %s199 = smul.u32 2, %s22
        %v200 = vld [vmem:[%s197] sm:$0xff]
        %v201 = vld [vmem:[%s1] sm:$0xff]
        %v202 = vld [vmem:[%s2] sm:$0xff]
        %204 = vset.pattern.permute.xlu0 0
        %205 = vperm.xlu0 %204, %v202
        %v206 = vpop.permute.xlu0 %205
        %209 = vset.pattern.permute.xlu0 0
        %210 = vperm.xlu0 %209, %v201
        %v211 = vpop.permute.xlu0 %210
        %v214 = vperm.slane %v200, 0
        %v215 = vperm.slane %v200, 4
        %v218 = vperm.slane %v214, 0
        %v219 = vperm.slane %v215, 0
        %v220 = vmul.f32 %v211, %v218
        %v221 = vmul.f32 %v211, %v219
        %v222 = vadd.f32 %v206, %v220
        %v223 = vadd.f32 %v206, %v221
        %224 = vset.pattern.permute.xlu0 1
        %225 = vperm.xlu0 %224, %v201
        %v226 = vpop.permute.xlu0 %225
        %v228 = vperm.slane %v200, 1
        %v229 = vperm.slane %v200, 5
        %v232 = vperm.slane %v228, 1
        %v233 = vperm.slane %v229, 1
        %v234 = vmul.f32 %v226, %v232
        %v235 = vmul.f32 %v226, %v233
        %v236 = vadd.f32 %v222, %v234
        %v237 = vadd.f32 %v223, %v235
        %238 = vset.pattern.permute.xlu0 2
        %239 = vperm.xlu0 %238, %v201
        %v240 = vpop.permute.xlu0 %239
        %v242 = vperm.slane %v200, 2
        %v243 = vperm.slane %v200, 6
        %v246 = vperm.slane %v242, 2
        %v247 = vperm.slane %v243, 2
        %v248 = vmul.f32 %v240, %v246
        %v249 = vmul.f32 %v240, %v247
        %v250 = vadd.f32 %v236, %v248
        %v251 = vadd.f32 %v237, %v249
        %252 = vset.pattern.permute.xlu0 3
        %253 = vperm.xlu0 %252, %v201
        %v254 = vpop.permute.xlu0 %253
        %v256 = vperm.slane %v200, 3
        %v257 = vperm.slane %v200, 7
        %v260 = vperm.slane %v256, 3
        %v261 = vperm.slane %v257, 3
        %v262 = vmul.f32 %v254, %v260
        %v263 = vmul.f32 %v254, %v261
        %v264 = vadd.f32 %v250, %v262
        %v265 = vadd.f32 %v251, %v263
        %266 = vst [vmem:[%s188] sm:$0xff] %v264
        %267 = vst [vmem:[%s188 + $0x8] sm:$0xff] %v265
        %s268 = sand.u32 %s109, 1
        %s269 = scalar_lea.sflag [#allocation3], %s268
        %s270 = sand.u32 %s109, 1
        %s271 = smul.addr %s270, 16
        %s272 = scalar_lea.vmem [#allocation2], %s271
        // Predicated region
        $region33: #{tpu_custom_call.1} parent=31 // pred_check
          %p273 = pneg %p119
        $region34: #{tpu_custom_call.1} parent=31 // pred_check_branch
          %275 = sbr.rel (%p273) target = $region36
        $region35: #{tpu_custom_call.1} parent=31 // pred_region
          %s276 = smul.u32 2, %s22
          %278 = vsyncadd %s269, 0
          %s279 = smul.addr %s21, 2
          %s280 = sadd.s32 %s276, %s279
          %s281 = smul.addr %s280, 8
          %s282 = scalar_lea.hbm %s3, %s281
          %s284 = sshll.u32 %s272, 4
          %s285 = int_to_ptr.vmem [resolvable:$true] %s284
          %s286 = sshll.u32 %s282, 4
          %s287 = int_to_ptr.hbm [resolvable:$true] %s286
          %289 = dma.vmem_to_hbm [thread:$0]  %s285, 256, %s287, %s269
        $region36: #{tpu_custom_call.1} parent=31 // pred_fallthru
          _
      $region32: #{tpu_custom_call.1} parent=5 // pred_fallthru
        _
      %p290 = scmp.le.s32.totalorder 2, %s12
      // Predicated region
      $region37: #{tpu_custom_call.1} parent=5 // pred_check
        %p291 = pneg %p290
      $region38: #{tpu_custom_call.1} parent=5 // pred_check_branch
        %293 = sbr.rel (%p291) target = $region40
      $region39: #{tpu_custom_call.1} parent=5 // pred_region
        %s294 = ssub.s32 %s12, 2
        // Predicated region
        $region41: #{tpu_custom_call.1} parent=39 // pred_check
          %p295 = pneg %p125
        $region42: #{tpu_custom_call.1} parent=39 // pred_check_branch
          %297 = sbr.rel (%p295) target = $region44
        $region43: #{tpu_custom_call.1} parent=39 // pred_region
          %s298 = sand.u32 %s110, 1
          %s299 = scalar_lea.sflag [#allocation3], %s298
          %s300 = sand.u32 %s110, 1
          %s301 = smul.addr %s300, 16
          %s302 = scalar_lea.vmem [#allocation2], %s301
          %304 = dma.done %s299, 256
        $region44: #{tpu_custom_call.1} parent=39 // pred_fallthru
          _
      $region40: #{tpu_custom_call.1} parent=5 // pred_fallthru
        _
    $region6: #{tpu_custom_call.1} parent=1 // loop_footer
      %s16 = sadd.s32 1, %s12
    $region7: #{tpu_custom_call.1} parent=1 // loop_footer_branch
      %11 = sbr.rel target = $region3
    $region8: #{tpu_custom_call.1} parent=1 // loop_exit
      _
    %305 = vsyncpa [#allocation3], 1
    %s306 = scalar_lea.sflag [#allocation3], 1
    %307 = vsyncpa %s306, 1

</llo_original>
